<compile_context>
chip_gen: v5e
topology: v5e:2x2
jax: 0.10.0
libtpu: 0.0.40
codegen_flags: <defaults>
</compile_context>

<pallas_src>
import jax
import jax.numpy as jnp
from jax import lax
from jax.experimental import pallas as pl
from jax.experimental.pallas import tpu as pltpu


# ----------------------------------------------------------------------------
# Fused kernel: single im2col matmul + bias + ReLU + channel mask.
# Channels sit on the sublane axis, rows (n,h,w) on the 128-lane axis.
# ----------------------------------------------------------------------------
def _nas_block_kernel(pt_ref, wt_ref, bm_ref, o_ref):
    # pt_ref: (K9C, TR)   im2col patches, transposed (K on sublanes, rows on lanes)
    # wt_ref: (Cout, K9C) conv weight, reshaped+transposed
    # bm_ref: (Cout, 2)   column 0 = conv bias, column 1 = channel mask
    # o_ref:  (Cout, TR)  lane-dense output block
    acc = jnp.dot(wt_ref[...], pt_ref[...], preferred_element_type=jnp.float32)
    acc = acc + bm_ref[:, 0:1]          # bias   (broadcast along lanes)
    acc = jnp.maximum(acc, 0.0)         # ReLU
    acc = acc * bm_ref[:, 1:2]          # ChannelSelector mask (post-ReLU)
    o_ref[...] = acc.astype(o_ref.dtype)


def nas_base_hybrid_sequential(x_nchw, block_channel_mask, weight_hwio, bias):
    """Pallas implementation of NasBaseHybridSequential forward.

    x_nchw:             (N, Cin, H, W)   float32
    block_channel_mask: (1, M)           float32, M >= Cout (narrowed to Cout)
    weight_hwio:        (3, 3, Cin, Cout)
    bias:               (Cout,)
    returns:            (N, Cout, H, W)  float32
    """
    N, Cin, H, W = x_nchw.shape
    KH, KW, _, Cout = weight_hwio.shape
    K9C = KH * KW * Cin
    R = N * H * W

    # --- im2col + weight/bias/mask packing: plain JAX glue (tiny arrays) ---
    x_pad = jnp.pad(x_nchw, ((0, 0), (0, 0), (1, 1), (1, 1)))      # padding=1
    taps = [
        x_pad[:, :, kh:kh + H, kw:kw + W]                          # (N,Cin,H,W)
        for kh in range(KH) for kw in range(KW)
    ]
    pt = jnp.stack(taps, axis=0)                                   # (9,N,Cin,H,W)
    pt = jnp.transpose(pt, (0, 2, 1, 3, 4))                        # (9,Cin,N,H,W)
    pt = pt.reshape(K9C, R)                                        # (36, N*H*W)

    wt = jnp.transpose(weight_hwio.reshape(K9C, Cout))             # (Cout, 36)
    mask = block_channel_mask[0, :Cout]                            # narrow(1,0,C)
    bm = jnp.stack([bias, mask], axis=-1)                          # (Cout, 2)

    # Grid: split the row (lane) axis in two when alignment allows -> keeps
    # both TensorCores busy on v7x; on v5e/v6e it is just 2 cheap steps.
    grid_r = 2 if (R % 256 == 0) else 1
    row_block = R // grid_r

    out_t = pl.pallas_call(
        _nas_block_kernel,
        out_shape=jax.ShapeDtypeStruct((Cout, R), jnp.float32),
        grid_spec=pltpu.PrefetchScalarGridSpec(
            num_scalar_prefetch=0,
            grid=(grid_r,),
            in_specs=[
                pl.BlockSpec((K9C, row_block), lambda r: (0, r)),
                pl.BlockSpec((Cout, K9C), lambda r: (0, 0)),
                pl.BlockSpec((Cout, 2), lambda r: (0, 0)),
            ],
            out_specs=pl.BlockSpec((Cout, row_block), lambda r: (0, r)),
        ),
        compiler_params=pltpu.CompilerParams(
            dimension_semantics=("parallel",),
        ),
    )(pt, wt, bm)

    # (Cout, N*H*W) -> (N, Cout, H, W)
    return jnp.transpose(out_t.reshape(Cout, N, H, W), (1, 0, 2, 3))


# ----------------------------------------------------------------------------
# Pure-JAX reference (same math) for correctness check.
# ----------------------------------------------------------------------------
def _reference(x_nchw, block_channel_mask, weight_hwio, bias):
    Cout = weight_hwio.shape[-1]
    w_oihw = jnp.transpose(weight_hwio, (3, 2, 0, 1))
    y = lax.conv_general_dilated(
        x_nchw, w_oihw, window_strides=(1, 1), padding=((1, 1), (1, 1)),
        dimension_numbers=("NCHW", "OIHW", "NCHW"),
    )
    y = y + bias.reshape(1, Cout, 1, 1)
    y = jnp.maximum(y, 0.0)
    mask = block_channel_mask[:, :Cout].reshape(1, Cout, 1, 1)
    return y * mask


if __name__ == "__main__":
    key = jax.random.PRNGKey(0)
    k_x, k_w, k_b, k_m = jax.random.split(key, 4)

    N, Cin, H, W = 2, 4, 16, 16
    Cout = 8
    M = 10  # len(candidate_scales): mask is wider than Cout, gets narrowed

    x = jax.random.normal(k_x, (N, Cin, H, W), dtype=jnp.float32)
    weight = jax.random.normal(k_w, (3, 3, Cin, Cout), dtype=jnp.float32) * 0.1
    bias = jax.random.normal(k_b, (Cout,), dtype=jnp.float32) * 0.1
    block_channel_mask = jax.random.uniform(k_m, (1, M), dtype=jnp.float32)

    out = nas_base_hybrid_sequential(x, block_channel_mask, weight, bias)
    out = jax.block_until_ready(out)

    ref = _reference(x, block_channel_mask, weight, bias)
    assert out.shape == (N, Cout, H, W)
    assert jnp.allclose(out, ref, atol=1e-4, rtol=1e-4), (
        float(jnp.max(jnp.abs(out - ref)))
    )

    # TODO(synk): the full NasHybridSequential dispatches among 4 ShuffleNet
    # candidate blocks via a runtime `block_choice`; only the canonical
    # conv->ReLU->ChannelSelector sub-sequence is realized in this kernel.
    print("KERNEL_OK")
</pallas_src>

<mosaic_0001>
module attributes {stable_mosaic.version = 11 : i64} {
  func.func @_nas_block_kernel(%arg0: i32, %arg1: memref<36x256xf32, #tpu.memory_space<vmem>>, %arg2: memref<8x36xf32, #tpu.memory_space<vmem>>, %arg3: memref<8x2xf32, #tpu.memory_space<vmem>>, %arg4: memref<8x256xf32, #tpu.memory_space<vmem>>) attributes {dimension_semantics = [#tpu.dimension_semantics<parallel>], iteration_bounds = array<i64: 2>, scalar_prefetch = 0 : i64, scratch_operands = 0 : i64, tpu.core_type = #tpu.core_type<tc>, window_params = [{transform_indices = @transform_0, window_bounds = array<i64: 36, 256>}, {pipeline_mode = #tpu.pipeline_mode<synchronous>, transform_indices = @transform_1, window_bounds = array<i64: 8, 36>}, {pipeline_mode = #tpu.pipeline_mode<synchronous>, transform_indices = @transform_2, window_bounds = array<i64: 8, 2>}, {transform_indices = @transform_3, window_bounds = array<i64: 8, 256>}]} {
    %c0 = arith.constant 0 : index
    %c0_0 = arith.constant 0 : index
    %0 = vector.load %arg2[%c0, %c0_0] : memref<8x36xf32, #tpu.memory_space<vmem>>, vector<8x36xf32>
    %c0_1 = arith.constant 0 : index
    %c0_2 = arith.constant 0 : index
    %1 = vector.load %arg1[%c0_1, %c0_2] : memref<36x256xf32, #tpu.memory_space<vmem>>, vector<36x256xf32>
    %cst = arith.constant dense<0.000000e+00> : vector<8x256xf32>
    %2 = tpu.matmul %0, %1, %cst {dimension_numbers = #tpu.dot_dimension_numbers<[1], [0], [0], [1], [0, 0, 1, 1], [], []>} : vector<8x36xf32>, vector<36x256xf32>, vector<8x256xf32> -> vector<8x256xf32>
    %c0_3 = arith.constant 0 : index
    %c0_4 = arith.constant 0 : index
    %3 = vector.load %arg3[%c0_3, %c0_4] : memref<8x2xf32, #tpu.memory_space<vmem>>, vector<8x1xf32>
    %4 = vector.broadcast %3 : vector<8x1xf32> to vector<8x256xf32>
    %5 = arith.addf %2, %4 : vector<8x256xf32>
    %cst_5 = arith.constant 0.000000e+00 : f32
    %6 = vector.broadcast %cst_5 : f32 to vector<8x256xf32>
    %7 = arith.maximumf %5, %6 : vector<8x256xf32>
    %c0_6 = arith.constant 0 : index
    %c1 = arith.constant 1 : index
    %8 = vector.load %arg3[%c0_6, %c1] : memref<8x2xf32, #tpu.memory_space<vmem>>, vector<8x1xf32>
    %9 = vector.broadcast %8 : vector<8x1xf32> to vector<8x256xf32>
    %10 = arith.mulf %7, %9 : vector<8x256xf32>
    %c0_7 = arith.constant 0 : index
    %c0_8 = arith.constant 0 : index
    %11 = vector.load %arg4[%c0_7, %c0_8] : memref<8x256xf32, #tpu.memory_space<vmem>>, vector<8x256xf32>
    tpu.vector_store %arg4[%c0_7, %c0_8], %10 {strides = array<i32>} : memref<8x256xf32, #tpu.memory_space<vmem>>, vector<8x256xf32>,
    return
  }
  func.func @transform_0(%arg0: i32) -> (i32, i32) {
    %c0_i32 = arith.constant 0 : i32
    %c0_i32_0 = arith.constant 0 : i32
    return %c0_i32, %arg0 : i32, i32
  }
  func.func @transform_1(%arg0: i32) -> (i32, i32) {
    %c0_i32 = arith.constant 0 : i32
    %c0_i32_0 = arith.constant 0 : i32
    %c0_i32_1 = arith.constant 0 : i32
    return %c0_i32, %c0_i32_0 : i32, i32
  }
  func.func @transform_2(%arg0: i32) -> (i32, i32) {
    %c0_i32 = arith.constant 0 : i32
    %c0_i32_0 = arith.constant 0 : i32
    %c0_i32_1 = arith.constant 0 : i32
    return %c0_i32, %c0_i32_0 : i32, i32
  }
  func.func @transform_3(%arg0: i32) -> (i32, i32) {
    %c0_i32 = arith.constant 0 : i32
    %c0_i32_0 = arith.constant 0 : i32
    return %c0_i32, %arg0 : i32, i32
  }
}

</mosaic_0001>

<llo_original>
// kernel: tpu_custom_call.1
$region0: #{tpu_custom_call.1}
  #allocation0 [shape = 'u32[]', space=smem, size = 0x4, offset = 0x4, fixed_abs, tag = 'smem constant byte address 0x4 - core index']
  #allocation1 [shape = 'u32[72,128]{1,0:T(1,128)}', space=vmem, size = 0x9000, scoped, tag = 'internal scratch']
  %s0 = inlined_call_operand.hbm [shape: f32[36,512], index: 0, kind: input, shape index: {}]
  %s1 = inlined_call_operand.vmem [shape: f32[8,36], index: 1, kind: input, shape index: {}]
  %s2 = inlined_call_operand.vmem [shape: f32[8,2], index: 2, kind: input, shape index: {}]
  %s3 = inlined_call_operand.hbm [shape: f32[8,512], index: 3, kind: output, shape index: {}]
  %s4 = sld [smem:[#allocation0]]
  $region49: #{tpu_custom_call.1} parent=0
    _
  %s6 = ssub.s32 1, %s4
  %s7 = scalar_select 0, %s6, %s4
  $region1: #{tpu_custom_call.1} parent=0
    #allocation2 [shape = 'u8[81920]{0}', space=vmem, size = 0x14000, scoped, tag = 'input window, operand 0']
    #allocation3 [shape = 's32[2]{0}', space=sflag, size = 0x8, scoped, tag = 'scoped memory for tpu_custom_call.1']
    #allocation4 [shape = 's32[2]{0}', space=sflag, size = 0x8, scoped, tag = 'scoped memory for tpu_custom_call.1']
    #allocation5 [shape = 'u8[16384]{0}', space=vmem, size = 0x4000, scoped, tag = 'output window, operand 0']
    %8 = vsyncpa [#allocation3], 0
    %s9 = scalar_lea.sflag [#allocation3], 1
    %10 = vsyncpa %s9, 0
    %11 = vsyncpa [#allocation4], 0
    %s12 = scalar_lea.sflag [#allocation4], 1
    %13 = vsyncpa %s12, 0
    loop: start=0, step=1, limit=4
    $region2: #{tpu_custom_call.1} parent=1 // loop_pre_header
      _
    $region3: #{tpu_custom_call.1} parent=1 // loop_header
      %s15 = sphi 0, %s19
      %p16 = scmp.ge.s32.totalorder %s15, 4
      %s25 = sphi 0, %s27
      %s28 = sphi 0, %s25
      %s29 = sphi 0, %s28
      %s45 = sphi 0, %s29
      %s49 = sphi 0, %s49
      %s51 = sphi 0, %s49
      %s52 = sphi 0, %s51
      %s66 = sphi 0, %s52
      %s70 = sphi 0, %s70
      %s72 = sphi 0, %s70
      %s73 = sphi 0, %s72
      %s87 = sphi 0, %s73
      %s93 = sphi 0, %s95
      %s96 = sphi 0, %s93
      %s97 = sphi 0, %s96
      %s113 = sphi 0, %s97
    $region4: #{tpu_custom_call.1} parent=1 // loop_header_branch
      %18 = sbr.rel (%p16) target = $region8
    $region5: #{tpu_custom_call.1} parent=1 // loop_body
      %s20 = ssub.s32 %s15, 1
      %s21 = ssub.s32 %s15, 2
      %s22 = sadd.s32 %s15, 1
      %s23 = ssub.s32 %s15, %s22
      %p24 = scmp.eq.s32.totalorder %s23, 0
      %s26 = sadd.s32 %s25, 1
      %s27 = scalar_select %p24, %s25, %s26
      %p30 = pneg %p24
      %p31 = scmp.eq.s32.totalorder %s15, 1
      %p32 = por %p30, %p31
      %p33 = scmp.ne.s32.totalorder %s25, %s28
      %p34 = scmp.eq.s32.totalorder %s15, 0
      %p35 = por %p33, %p34
      %p36 = scmp.ne.s32.totalorder %s25, %s28
      %p37 = scmp.eq.s32.totalorder %s20, 1
      %p38 = por %p36, %p37
      %p39 = scmp.ne.s32.totalorder %s28, %s29
      %p40 = scmp.eq.s32.totalorder %s20, 0
      %p41 = por %p39, %p40
      %p42 = scmp.ne.s32.totalorder %s28, %s29
      %p43 = scmp.eq.s32.totalorder %s21, 1
      %p44 = por %p42, %p43
      %p46 = scmp.ne.s32.totalorder %s29, %s45
      %p47 = scmp.eq.s32.totalorder %s21, 0
      %p48 = por %p46, %p47
      %s50 = sadd.s32 %s49, 1
      %p53 = scmp.eq.s32.totalorder %s15, 1
      %p54 = scmp.ne.s32.totalorder %s49, %s51
      %p55 = scmp.eq.s32.totalorder %s15, 0
      %p56 = por %p54, %p55
      %p57 = scmp.ne.s32.totalorder %s49, %s51
      %p58 = scmp.eq.s32.totalorder %s20, 1
      %p59 = por %p57, %p58
      %p60 = scmp.ne.s32.totalorder %s51, %s52
      %p61 = scmp.eq.s32.totalorder %s20, 0
      %p62 = por %p60, %p61
      %p63 = scmp.ne.s32.totalorder %s51, %s52
      %p64 = scmp.eq.s32.totalorder %s21, 1
      %p65 = por %p63, %p64
      %p67 = scmp.ne.s32.totalorder %s52, %s66
      %p68 = scmp.eq.s32.totalorder %s21, 0
      %p69 = por %p67, %p68
      %s71 = sadd.s32 %s70, 1
      %p74 = scmp.eq.s32.totalorder %s15, 1
      %p75 = scmp.ne.s32.totalorder %s70, %s72
      %p76 = scmp.eq.s32.totalorder %s15, 0
      %p77 = por %p75, %p76
      %p78 = scmp.ne.s32.totalorder %s70, %s72
      %p79 = scmp.eq.s32.totalorder %s20, 1
      %p80 = por %p78, %p79
      %p81 = scmp.ne.s32.totalorder %s72, %s73
      %p82 = scmp.eq.s32.totalorder %s20, 0
      %p83 = por %p81, %p82
      %p84 = scmp.ne.s32.totalorder %s72, %s73
      %p85 = scmp.eq.s32.totalorder %s21, 1
      %p86 = por %p84, %p85
      %p88 = scmp.ne.s32.totalorder %s73, %s87
      %p89 = scmp.eq.s32.totalorder %s21, 0
      %p90 = por %p88, %p89
      %s91 = ssub.s32 %s15, %s22
      %p92 = scmp.eq.s32.totalorder %s91, 0
      %s94 = sadd.s32 %s93, 1
      %s95 = scalar_select %p92, %s93, %s94
      %p98 = pneg %p92
      %p99 = scmp.eq.s32.totalorder %s15, 1
      %p100 = por %p98, %p99
      %p101 = scmp.ne.s32.totalorder %s93, %s96
      %p102 = scmp.eq.s32.totalorder %s15, 0
      %p103 = por %p101, %p102
      %p104 = scmp.ne.s32.totalorder %s93, %s96
      %p105 = scmp.eq.s32.totalorder %s20, 1
      %p106 = por %p104, %p105
      %p107 = scmp.ne.s32.totalorder %s96, %s97
      %p108 = scmp.eq.s32.totalorder %s20, 0
      %p109 = por %p107, %p108
      %p110 = scmp.ne.s32.totalorder %s96, %s97
      %p111 = scmp.eq.s32.totalorder %s21, 1
      %p112 = por %p110, %p111
      %p114 = scmp.ne.s32.totalorder %s97, %s113
      %p115 = scmp.eq.s32.totalorder %s21, 0
      %p116 = por %p114, %p115
      %p117 = scmp.le.s32.totalorder 1, %s15
      %p118 = scmp.lt.s32.totalorder %s15, 3
      %p119 = pnand %p117, %p118
      %p120 = pneg %p119
      // Predicated region
      $region9: #{tpu_custom_call.1} parent=5 // pred_check
        _
      $region10: #{tpu_custom_call.1} parent=5 // pred_check_branch
        %122 = sbr.rel (%p119) target = $region12
      $region11: #{tpu_custom_call.1} parent=5 // pred_region
        %s123 = ssub.s32 %s15, 1
        // Predicated region
        $region13: #{tpu_custom_call.1} parent=11 // pred_check
          %p124 = pneg %p62
        $region14: #{tpu_custom_call.1} parent=11 // pred_check_branch
          %126 = sbr.rel (%p124) target = $region16
        $region15: #{tpu_custom_call.1} parent=11 // pred_region
          _
        $region16: #{tpu_custom_call.1} parent=11 // pred_fallthru
          _
        // Predicated region
        $region17: #{tpu_custom_call.1} parent=11 // pred_check
          %p127 = pneg %p83
        $region18: #{tpu_custom_call.1} parent=11 // pred_check_branch
          %129 = sbr.rel (%p127) target = $region20
        $region19: #{tpu_custom_call.1} parent=11 // pred_region
          _
        $region20: #{tpu_custom_call.1} parent=11 // pred_fallthru
          _
      $region12: #{tpu_custom_call.1} parent=5 // pred_fallthru
        _
      %p130 = scmp.lt.s32.totalorder %s15, 2
      // Predicated region
      $region21: #{tpu_custom_call.1} parent=5 // pred_check
        %p131 = pneg %p130
      $region22: #{tpu_custom_call.1} parent=5 // pred_check_branch
        %133 = sbr.rel (%p131) target = $region24
      $region23: #{tpu_custom_call.1} parent=5 // pred_region
        // Predicated region
        $region25: #{tpu_custom_call.1} parent=23 // pred_check
          %p134 = pneg %p35
        $region26: #{tpu_custom_call.1} parent=23 // pred_check_branch
          %136 = sbr.rel (%p134) target = $region28
        $region27: #{tpu_custom_call.1} parent=23 // pred_region
          %s137 = sand.u32 %s25, 1
          %s138 = scalar_lea.sflag [#allocation3], %s137
          %s139 = sand.u32 %s25, 1
          %s140 = smul.addr %s139, 80
          %s141 = scalar_lea.vmem [#allocation2], %s140
          %s142 = smul.u32 2, %s15
          %144 = vsyncadd %s138, 0
          %s145 = smul.addr %s142, 8
          %s146 = scalar_lea.hbm %s0, %s145
          %s147 = sshll.u32 %s146, 4
          %s148 = int_to_ptr.hbm [resolvable:$true] %s147
          %s149 = sshll.u32 %s141, 4
          %s150 = int_to_ptr.vmem [resolvable:$true] %s149
          %155 = dma.hbm_to_vmem [thread:$0]  %s148, 1280, %s150, %s138, 512, 256, 16
        $region28: #{tpu_custom_call.1} parent=23 // pred_fallthru
          _
      $region24: #{tpu_custom_call.1} parent=5 // pred_fallthru
        _
      %p156 = scmp.le.s32.totalorder 1, %s15
      %p157 = scmp.lt.s32.totalorder %s15, 3
      %p158 = pnand %p156, %p157
      %p159 = pneg %p158
      // Predicated region
      $region29: #{tpu_custom_call.1} parent=5 // pred_check
        _
      $region30: #{tpu_custom_call.1} parent=5 // pred_check_branch
        %161 = sbr.rel (%p158) target = $region32
      $region31: #{tpu_custom_call.1} parent=5 // pred_region
        %s162 = ssub.s32 %s15, 1
        %s163 = sand.u32 %s28, 1
        %s164 = scalar_lea.sflag [#allocation3], %s163
        %s165 = sand.u32 %s28, 1
        %s166 = smul.addr %s165, 80
        %s167 = scalar_lea.vmem [#allocation2], %s166
        // Predicated region
        $region33: #{tpu_custom_call.1} parent=31 // pred_check
          %p168 = pneg %p41
        $region34: #{tpu_custom_call.1} parent=31 // pred_check_branch
          %170 = sbr.rel (%p168) target = $region36
        $region35: #{tpu_custom_call.1} parent=31 // pred_region
          %172 = dma.done %s164, 1280
        $region36: #{tpu_custom_call.1} parent=31 // pred_fallthru
          _
        %s173 = sand.u32 %s28, 1
        %s174 = scalar_lea.sflag [#allocation3], %s173
        %s175 = sand.u32 %s28, 1
        %s176 = smul.addr %s175, 80
        %s177 = scalar_lea.vmem [#allocation2], %s176
        %p178 = pneg %p41
        %p179 = pneg %p38
        %p180 = pneg %p62
        %p181 = pneg %p59
        %p182 = pneg %p83
        %p183 = pneg %p80
        %p184 = pneg %p109
        %p185 = pneg %p106
        %s186 = sand.u32 %s96, 1
        %s187 = scalar_lea.sflag [#allocation4], %s186
        %s188 = sand.u32 %s96, 1
        %s189 = smul.addr %s188, 16
        %s190 = scalar_lea.vmem [#allocation5], %s189
        %s191 = smul.u32 2, %s20
        %s192 = smul.u32 2, %s20
        %v193 = vld [vmem:[%s1] sm:$0xff]
        %v194 = vld [vmem:[%s167] sm:$0xff]
        %v195 = vld [vmem:[%s167 + $0x8] sm:$0xff]
        %v196 = vld [vmem:[%s167 + $0x10] sm:$0xff]
        %v197 = vld [vmem:[%s167 + $0x18] sm:$0xff]
        %v198 = vld [vmem:[%s167 + $0x20] sm:$0xff]
        %v199 = vld [vmem:[%s167 + $0x28] sm:$0xff]
        %v200 = vld [vmem:[%s167 + $0x30] sm:$0xff]
        %v201 = vld [vmem:[%s167 + $0x38] sm:$0xff]
        %v202 = vld [vmem:[%s167 + $0x40] sm:$0xf]
        %v203 = vld [vmem:[%s167 + $0x48] sm:$0xf]
        %v204 = vld [vmem:[%s2] sm:$0xff]
        %206 = vset.pattern.permute.xlu0 0
        %207 = vperm.xlu0 %206, %v204
        %v208 = vpop.permute.xlu0 %207
        %vm210 = vcmask 293888
        %v212 = vsel %vm210, %v193, 0
        %vm214 = vcmask 1043456
        %v216 = vsel %vm214, %v202, 0
        %v219 = vsel %vm214, %v203, 0
        %221 = vmatpush.msra.mxu0 0.0
        %222 = vmatpush.msra.mxu0 0.0
        %223 = vmatpush.msra.mxu0 0.0
        %224 = vmatpush.msra.mxu0 0.0
        %225 = vmatpush.msra.mxu0 0.0
        %226 = vmatpush.msra.mxu0 0.0
        %227 = vmatpush.msra.mxu0 0.0
        %228 = vmatpush.msra.mxu0 0.0
        %229 = vmatpush.msra.mxu0 0.0
        %230 = vmatpush.msra.mxu0 0.0
        %231 = vmatpush.msra.mxu0 0.0
        %232 = vmatpush.msra.mxu0 %v216
        %233 = vmatpush.msra.mxu0 %v200
        %234 = vmatpush.msra.mxu0 %v198
        %235 = vmatpush.msra.mxu0 %v196
        %236 = vmatpush.msra.mxu0 %v194
        %237 = vmatmul.f32.gmra.mxu0 %v212
        %v238 = vpop.f32.mrf.mxu0
        %v239 = vadd.f32 %v208, %v238
        %240 = vdwg.mxu0
        %241 = vmatpush.msra.mxu0 0.0
        %242 = vmatpush.msra.mxu0 0.0
        %243 = vmatpush.msra.mxu0 0.0
        %244 = vmatpush.msra.mxu0 0.0
        %245 = vmatpush.msra.mxu0 0.0
        %246 = vmatpush.msra.mxu0 0.0
        %247 = vmatpush.msra.mxu0 0.0
        %248 = vmatpush.msra.mxu0 0.0
        %249 = vmatpush.msra.mxu0 0.0
        %250 = vmatpush.msra.mxu0 0.0
        %251 = vmatpush.msra.mxu0 0.0
        %252 = vmatpush.msra.mxu0 %v219
        %253 = vmatpush.msra.mxu0 %v201
        %254 = vmatpush.msra.mxu0 %v199
        %255 = vmatpush.msra.mxu0 %v197
        %256 = vmatpush.msra.mxu0 %v195
        %257 = vmatmul.f32.gmra.mxu0 %v212
        %v258 = vpop.f32.mrf.mxu0
        %v259 = vadd.f32 %v208, %v258
        %260 = vdwg.mxu0
        %v261 = vmax.f32 %v239, 0.0
        %v262 = vmax.f32 %v259, 0.0
        %263 = vset.pattern.permute.xlu0 1
        %264 = vperm.xlu0 %263, %v204
        %v265 = vpop.permute.xlu0 %264
        %v267 = vmul.f32 %v261, %v265
        %v268 = vmul.f32 %v262, %v265
        %269 = vst [vmem:[%s190] sm:$0xff] %v267
        %270 = vst [vmem:[%s190 + $0x8] sm:$0xff] %v268
        %s271 = sand.u32 %s96, 1
        %s272 = scalar_lea.sflag [#allocation4], %s271
        %s273 = sand.u32 %s96, 1
        %s274 = smul.addr %s273, 16
        %s275 = scalar_lea.vmem [#allocation5], %s274
        // Predicated region
        $region37: #{tpu_custom_call.1} parent=31 // pred_check
          %p276 = pneg %p106
        $region38: #{tpu_custom_call.1} parent=31 // pred_check_branch
          %278 = sbr.rel (%p276) target = $region40
        $region39: #{tpu_custom_call.1} parent=31 // pred_region
          %s279 = smul.u32 2, %s20
          %281 = vsyncadd %s272, 0
          %s282 = smul.addr %s279, 8
          %s283 = scalar_lea.hbm %s3, %s282
          %s285 = sshll.u32 %s275, 4
          %s286 = int_to_ptr.vmem [resolvable:$true] %s285
          %s287 = sshll.u32 %s283, 4
          %s288 = int_to_ptr.hbm [resolvable:$true] %s287
          %290 = dma.vmem_to_hbm [thread:$0]  %s286, 256, %s288, %s272
        $region40: #{tpu_custom_call.1} parent=31 // pred_fallthru
          _
      $region32: #{tpu_custom_call.1} parent=5 // pred_fallthru
        _
      %p291 = scmp.le.s32.totalorder 2, %s15
      // Predicated region
      $region41: #{tpu_custom_call.1} parent=5 // pred_check
        %p292 = pneg %p291
      $region42: #{tpu_custom_call.1} parent=5 // pred_check_branch
        %294 = sbr.rel (%p292) target = $region44
      $region43: #{tpu_custom_call.1} parent=5 // pred_region
        %s295 = ssub.s32 %s15, 2
        // Predicated region
        $region45: #{tpu_custom_call.1} parent=43 // pred_check
          %p296 = pneg %p112
        $region46: #{tpu_custom_call.1} parent=43 // pred_check_branch
          %298 = sbr.rel (%p296) target = $region48
        $region47: #{tpu_custom_call.1} parent=43 // pred_region
          %s299 = sand.u32 %s97, 1
          %s300 = scalar_lea.sflag [#allocation4], %s299
          %s301 = sand.u32 %s97, 1
          %s302 = smul.addr %s301, 16
          %s303 = scalar_lea.vmem [#allocation5], %s302
          %305 = dma.done %s300, 256
        $region48: #{tpu_custom_call.1} parent=43 // pred_fallthru
          _
      $region44: #{tpu_custom_call.1} parent=5 // pred_fallthru
        _
    $region6: #{tpu_custom_call.1} parent=1 // loop_footer
      %s19 = sadd.s32 1, %s15
    $region7: #{tpu_custom_call.1} parent=1 // loop_footer_branch
      %14 = sbr.rel target = $region3
    $region8: #{tpu_custom_call.1} parent=1 // loop_exit
      _
    %306 = vsyncpa [#allocation3], 1
    %s307 = scalar_lea.sflag [#allocation3], 1
    %308 = vsyncpa %s307, 1
    %309 = vsyncpa [#allocation4], 1
    %s310 = scalar_lea.sflag [#allocation4], 1
    %311 = vsyncpa %s310, 1

</llo_original>
